<compile_context>
chip_gen: v7x
topology: tpu7x:2x2x1
jax: 0.10.0
libtpu: 0.0.40
codegen_flags: <defaults>
</compile_context>

<pallas_src>
import math
import numpy as np
import jax
import jax.numpy as jnp
from jax.experimental import pallas as pl
from jax.experimental.pallas import tpu as pltpu


# ----------------------------- Pallas kernel -------------------------------

def _make_depthconv_kernel(alpha, KK, center_idx):
    alpha = float(alpha)

    def kernel(x_ref, d_ref, w_ref, b_ref, o_ref):
        cdt = x_ref.dtype                                  # compute/storage dtype
        d = d_ref[...]                                     # (KK, TN) f32
        dcen = d[center_idx:center_idx + 1, :]             # (1, TN)
        dw = jnp.exp(-alpha * jnp.abs(dcen - d))           # (KK, TN)  EUP + VPU
        dw = dw.astype(cdt)                                # single cast (no-op for f32)

        acc = None
        for kk in range(KK):                               # KK taps, unrolled
            xk = x_ref[kk]                                 # (Cin, TN)
            wk = w_ref[kk]                                 # (OC, Cin)
            xw = xk * dw[kk:kk + 1, :]                     # lane-dense VPU multiply
            p = jnp.dot(wk, xw, preferred_element_type=jnp.float32)   # MXU (OC, TN)
            acc = p if acc is None else acc + p
        o_ref[...] = (acc + b_ref[...]).astype(o_ref.dtype)   # bias (OC,1) bcast

    return kernel


# ------------------------------ JAX wrapper ---------------------------------

def _extract_patch_taps(arr, K, stride, dilation, OH, OW):
    """arr: (C, B, Hp, Wp) padded -> (K*K, C, B, OH, OW), tap order (kh, kw)."""
    taps = []
    for kh in range(K):
        for kw in range(K):
            taps.append(arr[
                :, :,
                kh * dilation: kh * dilation + (OH - 1) * stride + 1: stride,
                kw * dilation: kw * dilation + (OW - 1) * stride + 1: stride,
            ])
    return jnp.stack(taps, axis=0)


def _vmem_capacity_bytes(default=64 * 1024 * 1024):
    try:
        info = pltpu.get_tpu_info()
        cap = getattr(info, "vmem_capacity_bytes", None)
        if cap:
            return int(cap)
    except Exception:
        pass
    return default


def depth_conv_forward(x, depth, weight, bias, *, stride=1, padding=0,
                       dilation=1, alpha=8.3, tile_n=None, use_bf16=False):
    """DepthConv forward.
    x: (B,Cin,H,W), depth: (B,1,H,W), weight: (OC,Cin,K,K), bias: (1,OC).
    Returns (B,OC,OH,OW) float32.
    use_bf16=True stores x/weight in bf16 (recommended on v6e/v7x; ~1e-2 rel err).
    """
    x = x.astype(jnp.float32)
    depth = depth.astype(jnp.float32)
    weight = weight.astype(jnp.float32)
    bias = bias.astype(jnp.float32)

    B, C, H, W = x.shape
    assert depth.shape[1] == 1, "depth must have a single channel"
    OC, _, K, _ = weight.shape
    dk = K + (K - 1) * (dilation - 1)
    OH = (H + 2 * padding - dk + stride) // stride
    OW = (W + 2 * padding - dk + stride) // stride

    KK = K * K
    F = C * KK
    N = B * OH * OW
    center_idx = (K // 2) * K + (K // 2)

    pad_hw = ((0, 0), (0, 0), (padding, padding), (padding, padding))
    # channel-leading layout so im2col needs no big transposes afterwards
    xp = jnp.transpose(jnp.pad(x, pad_hw), (1, 0, 2, 3))       # (C, B, Hp, Wp)
    dp = jnp.transpose(jnp.pad(depth, pad_hw), (1, 0, 2, 3))   # (1, B, Hp, Wp)

    x_cols = _extract_patch_taps(xp, K, stride, dilation, OH, OW).reshape(KK, C, N)
    d_cols = _extract_patch_taps(dp, K, stride, dilation, OH, OW).reshape(KK, N)

    # weight (OC, C, K, K) -> (K*K, OC, C), tap order matches _extract_patch_taps
    w_taps = jnp.transpose(weight.reshape(OC, C, KK), (2, 0, 1))
    b_col = bias.reshape(OC, 1)

    # ---- optional bf16 storage / bf16 MXU path (depth + exp stay f32)
    if use_bf16:
        x_cols = x_cols.astype(jnp.bfloat16)
        w_taps = w_taps.astype(jnp.bfloat16)
    x_itemsize = int(jnp.dtype(x_cols.dtype).itemsize)
    w_itemsize = int(jnp.dtype(w_taps.dtype).itemsize)

    # ---- generation-aware VMEM sizing
    vmem_cap = _vmem_capacity_bytes()            # 128 MiB v5e/v6e, 64 MiB v7x
    VMEM_BUDGET = int(vmem_cap * 0.70)

    bytes_per_col = F * x_itemsize + KK * 4 + OC * 4
    w_bytes = KK * OC * C * w_itemsize + OC * 4

    def tile_vmem(tn):
        # x/depth/out streams are double-buffered by the pipeliner; the
        # weight/bias blocks (constant index) are also allocated twice.
        return 2 * tn * bytes_per_col + 2 * w_bytes

    # ---- tile size selection: grow toward a few MiB/stage, then constrain
    LANE = 128
    n_lanes = pl.cdiv(N, LANE) * LANE
    if tile_n is None:
        TN = LANE
        target = min(VMEM_BUDGET, 16 << 20)
        while TN < 8192 and TN * 2 <= n_lanes and tile_vmem(TN * 2) <= target:
            TN *= 2
    else:
        TN = max(LANE, (int(tile_n) // LANE) * LANE)
    while TN > LANE and tile_vmem(TN) > VMEM_BUDGET:
        TN //= 2
    # keep the (megacore-)parallel grid at >= 4 steps when N allows it
    while TN > LANE and pl.cdiv(N, TN) < 4:
        TN //= 2

    Npad = pl.cdiv(N, TN) * TN
    if Npad != N:
        x_cols = jnp.pad(x_cols, ((0, 0), (0, 0), (0, Npad - N)))
        d_cols = jnp.pad(d_cols, ((0, 0), (0, Npad - N)))

    vmem_limit = int(min(int(vmem_cap * 0.85),
                         max(int(tile_vmem(TN) * 1.5) + (2 << 20), 16 << 20)))

    cost = pl.CostEstimate(
        flops=2 * Npad * F * OC,
        transcendentals=Npad * KK,
        bytes_accessed=(Npad * F * x_itemsize + Npad * KK * 4
                        + KK * OC * C * w_itemsize + OC * 4 + Npad * OC * 4),
    )

    kernel = _make_depthconv_kernel(alpha, KK, center_idx)

    out_cols = pl.pallas_call(
        kernel,
        out_shape=jax.ShapeDtypeStruct((OC, Npad), jnp.float32),
        grid=(Npad // TN,),
        in_specs=[
            pl.BlockSpec((KK, C, TN), lambda i: (0, 0, i)),   # x patches
            pl.BlockSpec((KK, TN), lambda i: (0, i)),         # depth patches
            pl.BlockSpec((KK, OC, C), lambda i: (0, 0, 0)),   # per-tap weights
            pl.BlockSpec((OC, 1), lambda i: (0, 0)),          # bias column
        ],
        out_specs=pl.BlockSpec((OC, TN), lambda i: (0, i)),   # lane-dense output
        compiler_params=pltpu.CompilerParams(
            dimension_semantics=("parallel",),
            vmem_limit_bytes=vmem_limit),
        cost_estimate=cost,
    )(x_cols, d_cols, w_taps, b_col)

    out = out_cols[:, :N].reshape(OC, B, OH, OW)
    return jnp.transpose(out, (1, 0, 2, 3))      # (B, OC, OH, OW)


# --------------------------- numpy reference --------------------------------

def ref_depthconv(x, depth, weight, bias, K, stride, pad, dil, alpha):
    x = np.asarray(x, np.float32)
    depth = np.asarray(depth, np.float32)
    weight = np.asarray(weight, np.float32)
    bias = np.asarray(bias, np.float32)
    B, C, H, W = x.shape
    OC = weight.shape[0]
    dk = K + (K - 1) * (dil - 1)
    OH = (H + 2 * pad - dk + stride) // stride
    OW = (W + 2 * pad - dk + stride) // stride
    xp = np.pad(x, ((0, 0), (0, 0), (pad, pad), (pad, pad)))
    dp = np.pad(depth, ((0, 0), (0, 0), (pad, pad), (pad, pad)))
    out = np.zeros((B, OC, OH, OW), np.float32)
    ww = K * dil
    for i in range(OH):
        for j in range(OW):
            xs, ys = i * stride, j * stride
            dwin = dp[:, :, xs:xs + ww:dil, ys:ys + ww:dil]   # (B, 1, K, K)
            xwin = xp[:, :, xs:xs + ww:dil, ys:ys + ww:dil]   # (B, C, K, K)
            cpix = dwin[:, :, K // 2, K // 2][:, :, None, None]
            dw = np.exp(-alpha * np.abs(cpix - dwin))
            val = (dw[:, None] * weight[None] * xwin[:, None]).sum(axis=(2, 3, 4))
            out[:, :, i, j] = val + bias
    return out


# --------------------------------- main --------------------------------------

if __name__ == "__main__":
    B, Cin, Cout, H, W = 2, 4, 8, 16, 16
    K, stride, padding, dilation, alpha = 3, 1, 1, 1, 8.3

    key = jax.random.PRNGKey(0)
    kx, kd, kw, kb = jax.random.split(key, 4)
    x = jax.random.normal(kx, (B, Cin, H, W), jnp.float32)
    depth = jax.random.uniform(kd, (B, 1, H, W), jnp.float32, 0.5, 5.0)
    weight = jax.random.normal(kw, (Cout, Cin, K, K), jnp.float32)
    bias = jax.random.normal(kb, (1, Cout), jnp.float32)

    ref = ref_depthconv(x, depth, weight, bias, K, stride, padding, dilation, alpha)

    # f32 path (default; v5e-friendly): tight tolerance.
    out = depth_conv_forward(x, depth, weight, bias, stride=stride,
                             padding=padding, dilation=dilation, alpha=alpha)
    out = jax.block_until_ready(out)
    np.testing.assert_allclose(np.asarray(out), ref, rtol=1e-4, atol=1e-4)

    # bf16 storage/MXU path (recommended on v6e/v7x): looser tolerance by design.
    out_bf16 = depth_conv_forward(x, depth, weight, bias, stride=stride,
                                  padding=padding, dilation=dilation,
                                  alpha=alpha, use_bf16=True)
    out_bf16 = jax.block_until_ready(out_bf16)
    np.testing.assert_allclose(np.asarray(out_bf16), ref, rtol=1e-1, atol=2e-1)

    print("KERNEL_OK")
</pallas_src>

<mosaic_0001>
module attributes {stable_mosaic.version = 11 : i64} {
  func.func @kernel(%arg0: i32, %arg1: memref<9x4x128xf32, #tpu.memory_space<vmem>>, %arg2: memref<9x128xf32, #tpu.memory_space<vmem>>, %arg3: memref<9x8x4xf32, #tpu.memory_space<vmem>>, %arg4: memref<8x1xf32, #tpu.memory_space<vmem>>, %arg5: memref<8x128xf32, #tpu.memory_space<vmem>>) attributes {dimension_semantics = [#tpu.dimension_semantics<parallel>], iteration_bounds = array<i64: 4>, scalar_prefetch = 0 : i64, scratch_operands = 0 : i64, tpu.core_type = #tpu.core_type<tc>, window_params = [{transform_indices = @transform_0, window_bounds = array<i64: 9, 4, 128>}, {transform_indices = @transform_1, window_bounds = array<i64: 9, 128>}, {pipeline_mode = #tpu.pipeline_mode<synchronous>, transform_indices = @transform_2, window_bounds = array<i64: 9, 8, 4>}, {pipeline_mode = #tpu.pipeline_mode<synchronous>, transform_indices = @transform_3, window_bounds = array<i64: 8, 1>}, {transform_indices = @transform_4, window_bounds = array<i64: 8, 128>}]} {
    %c0 = arith.constant 0 : index
    %c0_0 = arith.constant 0 : index
    %0 = vector.load %arg2[%c0, %c0_0] : memref<9x128xf32, #tpu.memory_space<vmem>>, vector<9x128xf32>
    %1 = vector.extract_strided_slice %0 {offsets = [4, 0], sizes = [1, 128], strides = [1, 1]} : vector<9x128xf32> to vector<1x128xf32>
    %2 = vector.broadcast %1 : vector<1x128xf32> to vector<9x128xf32>
    %3 = arith.subf %2, %0 : vector<9x128xf32>
    %4 = math.absf %3 : vector<9x128xf32>
    %cst = arith.constant -8.300000e+00 : f32
    %5 = vector.broadcast %cst : f32 to vector<9x128xf32>
    %6 = arith.mulf %5, %4 : vector<9x128xf32>
    %7 = math.exp %6 : vector<9x128xf32>
    %c0_1 = arith.constant 0 : index
    %c0_2 = arith.constant 0 : index
    %c0_3 = arith.constant 0 : index
    %8 = vector.load %arg1[%c0_1, %c0_2, %c0_3] : memref<9x4x128xf32, #tpu.memory_space<vmem>>, vector<1x4x128xf32>
    %9 = vector.shape_cast %8 : vector<1x4x128xf32> to vector<4x128xf32>
    %c0_4 = arith.constant 0 : index
    %c0_5 = arith.constant 0 : index
    %c0_6 = arith.constant 0 : index
    %10 = vector.load %arg3[%c0_4, %c0_5, %c0_6] : memref<9x8x4xf32, #tpu.memory_space<vmem>>, vector<1x8x4xf32>
    %11 = vector.shape_cast %10 : vector<1x8x4xf32> to vector<8x4xf32>
    %12 = vector.extract_strided_slice %7 {offsets = [0, 0], sizes = [1, 128], strides = [1, 1]} : vector<9x128xf32> to vector<1x128xf32>
    %13 = vector.broadcast %12 : vector<1x128xf32> to vector<4x128xf32>
    %14 = arith.mulf %9, %13 : vector<4x128xf32>
    %cst_7 = arith.constant dense<0.000000e+00> : vector<8x128xf32>
    %15 = tpu.matmul %11, %14, %cst_7 {dimension_numbers = #tpu.dot_dimension_numbers<[1], [0], [0], [1], [0, 0, 1, 1], [], []>} : vector<8x4xf32>, vector<4x128xf32>, vector<8x128xf32> -> vector<8x128xf32>
    %c1 = arith.constant 1 : index
    %c0_8 = arith.constant 0 : index
    %c0_9 = arith.constant 0 : index
    %16 = vector.load %arg1[%c1, %c0_8, %c0_9] : memref<9x4x128xf32, #tpu.memory_space<vmem>>, vector<1x4x128xf32>
    %17 = vector.shape_cast %16 : vector<1x4x128xf32> to vector<4x128xf32>
    %c1_10 = arith.constant 1 : index
    %c0_11 = arith.constant 0 : index
    %c0_12 = arith.constant 0 : index
    %18 = vector.load %arg3[%c1_10, %c0_11, %c0_12] : memref<9x8x4xf32, #tpu.memory_space<vmem>>, vector<1x8x4xf32>
    %19 = vector.shape_cast %18 : vector<1x8x4xf32> to vector<8x4xf32>
    %20 = vector.extract_strided_slice %7 {offsets = [1, 0], sizes = [1, 128], strides = [1, 1]} : vector<9x128xf32> to vector<1x128xf32>
    %21 = vector.broadcast %20 : vector<1x128xf32> to vector<4x128xf32>
    %22 = arith.mulf %17, %21 : vector<4x128xf32>
    %cst_13 = arith.constant dense<0.000000e+00> : vector<8x128xf32>
    %23 = tpu.matmul %19, %22, %cst_13 {dimension_numbers = #tpu.dot_dimension_numbers<[1], [0], [0], [1], [0, 0, 1, 1], [], []>} : vector<8x4xf32>, vector<4x128xf32>, vector<8x128xf32> -> vector<8x128xf32>
    %24 = arith.addf %15, %23 : vector<8x128xf32>
    %c2 = arith.constant 2 : index
    %c0_14 = arith.constant 0 : index
    %c0_15 = arith.constant 0 : index
    %25 = vector.load %arg1[%c2, %c0_14, %c0_15] : memref<9x4x128xf32, #tpu.memory_space<vmem>>, vector<1x4x128xf32>
    %26 = vector.shape_cast %25 : vector<1x4x128xf32> to vector<4x128xf32>
    %c2_16 = arith.constant 2 : index
    %c0_17 = arith.constant 0 : index
    %c0_18 = arith.constant 0 : index
    %27 = vector.load %arg3[%c2_16, %c0_17, %c0_18] : memref<9x8x4xf32, #tpu.memory_space<vmem>>, vector<1x8x4xf32>
    %28 = vector.shape_cast %27 : vector<1x8x4xf32> to vector<8x4xf32>
    %29 = vector.extract_strided_slice %7 {offsets = [2, 0], sizes = [1, 128], strides = [1, 1]} : vector<9x128xf32> to vector<1x128xf32>
    %30 = vector.broadcast %29 : vector<1x128xf32> to vector<4x128xf32>
    %31 = arith.mulf %26, %30 : vector<4x128xf32>
    %cst_19 = arith.constant dense<0.000000e+00> : vector<8x128xf32>
    %32 = tpu.matmul %28, %31, %cst_19 {dimension_numbers = #tpu.dot_dimension_numbers<[1], [0], [0], [1], [0, 0, 1, 1], [], []>} : vector<8x4xf32>, vector<4x128xf32>, vector<8x128xf32> -> vector<8x128xf32>
    %33 = arith.addf %24, %32 : vector<8x128xf32>
    %c3 = arith.constant 3 : index
    %c0_20 = arith.constant 0 : index
    %c0_21 = arith.constant 0 : index
    %34 = vector.load %arg1[%c3, %c0_20, %c0_21] : memref<9x4x128xf32, #tpu.memory_space<vmem>>, vector<1x4x128xf32>
    %35 = vector.shape_cast %34 : vector<1x4x128xf32> to vector<4x128xf32>
    %c3_22 = arith.constant 3 : index
    %c0_23 = arith.constant 0 : index
    %c0_24 = arith.constant 0 : index
    %36 = vector.load %arg3[%c3_22, %c0_23, %c0_24] : memref<9x8x4xf32, #tpu.memory_space<vmem>>, vector<1x8x4xf32>
    %37 = vector.shape_cast %36 : vector<1x8x4xf32> to vector<8x4xf32>
    %38 = vector.extract_strided_slice %7 {offsets = [3, 0], sizes = [1, 128], strides = [1, 1]} : vector<9x128xf32> to vector<1x128xf32>
    %39 = vector.broadcast %38 : vector<1x128xf32> to vector<4x128xf32>
    %40 = arith.mulf %35, %39 : vector<4x128xf32>
    %cst_25 = arith.constant dense<0.000000e+00> : vector<8x128xf32>
    %41 = tpu.matmul %37, %40, %cst_25 {dimension_numbers = #tpu.dot_dimension_numbers<[1], [0], [0], [1], [0, 0, 1, 1], [], []>} : vector<8x4xf32>, vector<4x128xf32>, vector<8x128xf32> -> vector<8x128xf32>
    %42 = arith.addf %33, %41 : vector<8x128xf32>
    %c4 = arith.constant 4 : index
    %c0_26 = arith.constant 0 : index
    %c0_27 = arith.constant 0 : index
    %43 = vector.load %arg1[%c4, %c0_26, %c0_27] : memref<9x4x128xf32, #tpu.memory_space<vmem>>, vector<1x4x128xf32>
    %44 = vector.shape_cast %43 : vector<1x4x128xf32> to vector<4x128xf32>
    %c4_28 = arith.constant 4 : index
    %c0_29 = arith.constant 0 : index
    %c0_30 = arith.constant 0 : index
    %45 = vector.load %arg3[%c4_28, %c0_29, %c0_30] : memref<9x8x4xf32, #tpu.memory_space<vmem>>, vector<1x8x4xf32>
    %46 = vector.shape_cast %45 : vector<1x8x4xf32> to vector<8x4xf32>
    %47 = vector.extract_strided_slice %7 {offsets = [4, 0], sizes = [1, 128], strides = [1, 1]} : vector<9x128xf32> to vector<1x128xf32>
    %48 = vector.broadcast %47 : vector<1x128xf32> to vector<4x128xf32>
    %49 = arith.mulf %44, %48 : vector<4x128xf32>
    %cst_31 = arith.constant dense<0.000000e+00> : vector<8x128xf32>
    %50 = tpu.matmul %46, %49, %cst_31 {dimension_numbers = #tpu.dot_dimension_numbers<[1], [0], [0], [1], [0, 0, 1, 1], [], []>} : vector<8x4xf32>, vector<4x128xf32>, vector<8x128xf32> -> vector<8x128xf32>
    %51 = arith.addf %42, %50 : vector<8x128xf32>
    %c5 = arith.constant 5 : index
    %c0_32 = arith.constant 0 : index
    %c0_33 = arith.constant 0 : index
    %52 = vector.load %arg1[%c5, %c0_32, %c0_33] : memref<9x4x128xf32, #tpu.memory_space<vmem>>, vector<1x4x128xf32>
    %53 = vector.shape_cast %52 : vector<1x4x128xf32> to vector<4x128xf32>
    %c5_34 = arith.constant 5 : index
    %c0_35 = arith.constant 0 : index
    %c0_36 = arith.constant 0 : index
    %54 = vector.load %arg3[%c5_34, %c0_35, %c0_36] : memref<9x8x4xf32, #tpu.memory_space<vmem>>, vector<1x8x4xf32>
    %55 = vector.shape_cast %54 : vector<1x8x4xf32> to vector<8x4xf32>
    %56 = vector.extract_strided_slice %7 {offsets = [5, 0], sizes = [1, 128], strides = [1, 1]} : vector<9x128xf32> to vector<1x128xf32>
    %57 = vector.broadcast %56 : vector<1x128xf32> to vector<4x128xf32>
    %58 = arith.mulf %53, %57 : vector<4x128xf32>
    %cst_37 = arith.constant dense<0.000000e+00> : vector<8x128xf32>
    %59 = tpu.matmul %55, %58, %cst_37 {dimension_numbers = #tpu.dot_dimension_numbers<[1], [0], [0], [1], [0, 0, 1, 1], [], []>} : vector<8x4xf32>, vector<4x128xf32>, vector<8x128xf32> -> vector<8x128xf32>
    %60 = arith.addf %51, %59 : vector<8x128xf32>
    %c6 = arith.constant 6 : index
    %c0_38 = arith.constant 0 : index
    %c0_39 = arith.constant 0 : index
    %61 = vector.load %arg1[%c6, %c0_38, %c0_39] : memref<9x4x128xf32, #tpu.memory_space<vmem>>, vector<1x4x128xf32>
    %62 = vector.shape_cast %61 : vector<1x4x128xf32> to vector<4x128xf32>
    %c6_40 = arith.constant 6 : index
    %c0_41 = arith.constant 0 : index
    %c0_42 = arith.constant 0 : index
    %63 = vector.load %arg3[%c6_40, %c0_41, %c0_42] : memref<9x8x4xf32, #tpu.memory_space<vmem>>, vector<1x8x4xf32>
    %64 = vector.shape_cast %63 : vector<1x8x4xf32> to vector<8x4xf32>
    %65 = vector.extract_strided_slice %7 {offsets = [6, 0], sizes = [1, 128], strides = [1, 1]} : vector<9x128xf32> to vector<1x128xf32>
    %66 = vector.broadcast %65 : vector<1x128xf32> to vector<4x128xf32>
    %67 = arith.mulf %62, %66 : vector<4x128xf32>
    %cst_43 = arith.constant dense<0.000000e+00> : vector<8x128xf32>
    %68 = tpu.matmul %64, %67, %cst_43 {dimension_numbers = #tpu.dot_dimension_numbers<[1], [0], [0], [1], [0, 0, 1, 1], [], []>} : vector<8x4xf32>, vector<4x128xf32>, vector<8x128xf32> -> vector<8x128xf32>
    %69 = arith.addf %60, %68 : vector<8x128xf32>
    %c7 = arith.constant 7 : index
    %c0_44 = arith.constant 0 : index
    %c0_45 = arith.constant 0 : index
    %70 = vector.load %arg1[%c7, %c0_44, %c0_45] : memref<9x4x128xf32, #tpu.memory_space<vmem>>, vector<1x4x128xf32>
    %71 = vector.shape_cast %70 : vector<1x4x128xf32> to vector<4x128xf32>
    %c7_46 = arith.constant 7 : index
    %c0_47 = arith.constant 0 : index
    %c0_48 = arith.constant 0 : index
    %72 = vector.load %arg3[%c7_46, %c0_47, %c0_48] : memref<9x8x4xf32, #tpu.memory_space<vmem>>, vector<1x8x4xf32>
    %73 = vector.shape_cast %72 : vector<1x8x4xf32> to vector<8x4xf32>
    %74 = vector.extract_strided_slice %7 {offsets = [7, 0], sizes = [1, 128], strides = [1, 1]} : vector<9x128xf32> to vector<1x128xf32>
    %75 = vector.broadcast %74 : vector<1x128xf32> to vector<4x128xf32>
    %76 = arith.mulf %71, %75 : vector<4x128xf32>
    %cst_49 = arith.constant dense<0.000000e+00> : vector<8x128xf32>
    %77 = tpu.matmul %73, %76, %cst_49 {dimension_numbers = #tpu.dot_dimension_numbers<[1], [0], [0], [1], [0, 0, 1, 1], [], []>} : vector<8x4xf32>, vector<4x128xf32>, vector<8x128xf32> -> vector<8x128xf32>
    %78 = arith.addf %69, %77 : vector<8x128xf32>
    %c8 = arith.constant 8 : index
    %c0_50 = arith.constant 0 : index
    %c0_51 = arith.constant 0 : index
    %79 = vector.load %arg1[%c8, %c0_50, %c0_51] : memref<9x4x128xf32, #tpu.memory_space<vmem>>, vector<1x4x128xf32>
    %80 = vector.shape_cast %79 : vector<1x4x128xf32> to vector<4x128xf32>
    %c8_52 = arith.constant 8 : index
    %c0_53 = arith.constant 0 : index
    %c0_54 = arith.constant 0 : index
    %81 = vector.load %arg3[%c8_52, %c0_53, %c0_54] : memref<9x8x4xf32, #tpu.memory_space<vmem>>, vector<1x8x4xf32>
    %82 = vector.shape_cast %81 : vector<1x8x4xf32> to vector<8x4xf32>
    %83 = vector.extract_strided_slice %7 {offsets = [8, 0], sizes = [1, 128], strides = [1, 1]} : vector<9x128xf32> to vector<1x128xf32>
    %84 = vector.broadcast %83 : vector<1x128xf32> to vector<4x128xf32>
    %85 = arith.mulf %80, %84 : vector<4x128xf32>
    %cst_55 = arith.constant dense<0.000000e+00> : vector<8x128xf32>
    %86 = tpu.matmul %82, %85, %cst_55 {dimension_numbers = #tpu.dot_dimension_numbers<[1], [0], [0], [1], [0, 0, 1, 1], [], []>} : vector<8x4xf32>, vector<4x128xf32>, vector<8x128xf32> -> vector<8x128xf32>
    %87 = arith.addf %78, %86 : vector<8x128xf32>
    %c0_56 = arith.constant 0 : index
    %c0_57 = arith.constant 0 : index
    %88 = vector.load %arg4[%c0_56, %c0_57] : memref<8x1xf32, #tpu.memory_space<vmem>>, vector<8x1xf32>
    %89 = vector.broadcast %88 : vector<8x1xf32> to vector<8x128xf32>
    %90 = arith.addf %87, %89 : vector<8x128xf32>
    %c0_58 = arith.constant 0 : index
    %c0_59 = arith.constant 0 : index
    %91 = vector.load %arg5[%c0_58, %c0_59] : memref<8x128xf32, #tpu.memory_space<vmem>>, vector<8x128xf32>
    tpu.vector_store %arg5[%c0_58, %c0_59], %90 {strides = array<i32>} : memref<8x128xf32, #tpu.memory_space<vmem>>, vector<8x128xf32>,
    return
  }
  func.func @transform_0(%arg0: i32) -> (i32, i32, i32) {
    %c0_i32 = arith.constant 0 : i32
    %c0_i32_0 = arith.constant 0 : i32
    %c0_i32_1 = arith.constant 0 : i32
    return %c0_i32, %c0_i32_0, %arg0 : i32, i32, i32
  }
  func.func @transform_1(%arg0: i32) -> (i32, i32) {
    %c0_i32 = arith.constant 0 : i32
    %c0_i32_0 = arith.constant 0 : i32
    return %c0_i32, %arg0 : i32, i32
  }
  func.func @transform_2(%arg0: i32) -> (i32, i32, i32) {
    %c0_i32 = arith.constant 0 : i32
    %c0_i32_0 = arith.constant 0 : i32
    %c0_i32_1 = arith.constant 0 : i32
    %c0_i32_2 = arith.constant 0 : i32
    return %c0_i32, %c0_i32_0, %c0_i32_1 : i32, i32, i32
  }
  func.func @transform_3(%arg0: i32) -> (i32, i32) {
    %c0_i32 = arith.constant 0 : i32
    %c0_i32_0 = arith.constant 0 : i32
    %c0_i32_1 = arith.constant 0 : i32
    return %c0_i32, %c0_i32_0 : i32, i32
  }
  func.func @transform_4(%arg0: i32) -> (i32, i32) {
    %c0_i32 = arith.constant 0 : i32
    %c0_i32_0 = arith.constant 0 : i32
    return %c0_i32, %arg0 : i32, i32
  }
}

</mosaic_0001>

<llo_original>
// kernel: tpu_custom_call.1
$region0: #{tpu_custom_call.1}
  #allocation0 [shape = 'u32[]', space=smem, size = 0x4, offset = 0x4, fixed_abs, tag = 'smem constant byte address 0x4 - core index']
  #allocation1 [shape = 'u32[144,128]{1,0:T(1,128)}', space=vmem, size = 0x12000, scoped, tag = 'internal scratch']
  %s0 = inlined_call_operand.hbm [shape: f32[9,4,512], index: 0, kind: input, shape index: {}]
  %s1 = inlined_call_operand.vmem [shape: f32[9,512], index: 1, kind: input, shape index: {}]
  %s2 = inlined_call_operand.vmem [shape: f32[9,8,4], index: 2, kind: input, shape index: {}]
  %s3 = inlined_call_operand.vmem [shape: f32[8,1], index: 3, kind: input, shape index: {}]
  %s4 = inlined_call_operand.hbm [shape: f32[8,512], index: 4, kind: output, shape index: {}]
  %s5 = sld [smem:[#allocation0]]
  $region91: #{tpu_custom_call.1} parent=0
    _
  %s7 = ssub.s32 1, %s5
  %s8 = scalar_select 0, %s7, %s5
  $region1: #{tpu_custom_call.1} parent=0
    #allocation2 [shape = 'u8[36864]{0}', space=vmem, size = 0x9000, scoped, tag = 'input window, operand 0']
    #allocation3 [shape = 's32[2]{0}', space=sflag, size = 0x8, scoped, tag = 'scoped memory for tpu_custom_call.1']
    #allocation4 [shape = 's32[2]{0}', space=sflag, size = 0x8, scoped, tag = 'scoped memory for tpu_custom_call.1']
    #allocation5 [shape = 'u8[16384]{0}', space=vmem, size = 0x4000, scoped, tag = 'input window, operand 1']
    #allocation6 [shape = 'u8[8192]{0}', space=vmem, size = 0x2000, scoped, tag = 'output window, operand 0']
    %9 = vsyncpa [#allocation3], 0
    %s10 = scalar_lea.sflag [#allocation3], 1
    %11 = vsyncpa %s10, 0
    %12 = vsyncpa [#allocation4], 0
    %s13 = scalar_lea.sflag [#allocation4], 1
    %14 = vsyncpa %s13, 0
    loop: start=0, step=1, limit=6
    $region2: #{tpu_custom_call.1} parent=1 // loop_pre_header
      _
    $region3: #{tpu_custom_call.1} parent=1 // loop_header
      %s16 = sphi 0, %s20
      %p17 = scmp.ge.s32.totalorder %s16, 6
      %s26 = sphi 0, %s28
      %s29 = sphi 0, %s26
      %s30 = sphi 0, %s29
      %s46 = sphi 0, %s30
      %s52 = sphi 0, %s54
      %s55 = sphi 0, %s52
      %s56 = sphi 0, %s55
      %s72 = sphi 0, %s56
      %s76 = sphi 0, %s76
      %s78 = sphi 0, %s76
      %s79 = sphi 0, %s78
      %s93 = sphi 0, %s79
      %s97 = sphi 0, %s97
      %s99 = sphi 0, %s97
      %s100 = sphi 0, %s99
      %s114 = sphi 0, %s100
      %s120 = sphi 0, %s122
      %s123 = sphi 0, %s120
      %s124 = sphi 0, %s123
      %s140 = sphi 0, %s124
    $region4: #{tpu_custom_call.1} parent=1 // loop_header_branch
      %19 = sbr.rel (%p17) target = $region8
    $region5: #{tpu_custom_call.1} parent=1 // loop_body
      %s21 = ssub.s32 %s16, 1
      %s22 = ssub.s32 %s16, 2
      %s23 = sadd.s32 %s16, 1
      %s24 = ssub.s32 %s16, %s23
      %p25 = scmp.eq.s32.totalorder %s24, 0
      %s27 = sadd.s32 %s26, 1
      %s28 = scalar_select %p25, %s26, %s27
      %p31 = pneg %p25
      %p32 = scmp.eq.s32.totalorder %s16, 3
      %p33 = por %p31, %p32
      %p34 = scmp.ne.s32.totalorder %s26, %s29
      %p35 = scmp.eq.s32.totalorder %s16, 0
      %p36 = por %p34, %p35
      %p37 = scmp.ne.s32.totalorder %s26, %s29
      %p38 = scmp.eq.s32.totalorder %s21, 3
      %p39 = por %p37, %p38
      %p40 = scmp.ne.s32.totalorder %s29, %s30
      %p41 = scmp.eq.s32.totalorder %s21, 0
      %p42 = por %p40, %p41
      %p43 = scmp.ne.s32.totalorder %s29, %s30
      %p44 = scmp.eq.s32.totalorder %s22, 3
      %p45 = por %p43, %p44
      %p47 = scmp.ne.s32.totalorder %s30, %s46
      %p48 = scmp.eq.s32.totalorder %s22, 0
      %p49 = por %p47, %p48
      %s50 = ssub.s32 %s16, %s23
      %p51 = scmp.eq.s32.totalorder %s50, 0
      %s53 = sadd.s32 %s52, 1
      %s54 = scalar_select %p51, %s52, %s53
      %p57 = pneg %p51
      %p58 = scmp.eq.s32.totalorder %s16, 3
      %p59 = por %p57, %p58
      %p60 = scmp.ne.s32.totalorder %s52, %s55
      %p61 = scmp.eq.s32.totalorder %s16, 0
      %p62 = por %p60, %p61
      %p63 = scmp.ne.s32.totalorder %s52, %s55
      %p64 = scmp.eq.s32.totalorder %s21, 3
      %p65 = por %p63, %p64
      %p66 = scmp.ne.s32.totalorder %s55, %s56
      %p67 = scmp.eq.s32.totalorder %s21, 0
      %p68 = por %p66, %p67
      %p69 = scmp.ne.s32.totalorder %s55, %s56
      %p70 = scmp.eq.s32.totalorder %s22, 3
      %p71 = por %p69, %p70
      %p73 = scmp.ne.s32.totalorder %s56, %s72
      %p74 = scmp.eq.s32.totalorder %s22, 0
      %p75 = por %p73, %p74
      %s77 = sadd.s32 %s76, 1
      %p80 = scmp.eq.s32.totalorder %s16, 3
      %p81 = scmp.ne.s32.totalorder %s76, %s78
      %p82 = scmp.eq.s32.totalorder %s16, 0
      %p83 = por %p81, %p82
      %p84 = scmp.ne.s32.totalorder %s76, %s78
      %p85 = scmp.eq.s32.totalorder %s21, 3
      %p86 = por %p84, %p85
      %p87 = scmp.ne.s32.totalorder %s78, %s79
      %p88 = scmp.eq.s32.totalorder %s21, 0
      %p89 = por %p87, %p88
      %p90 = scmp.ne.s32.totalorder %s78, %s79
      %p91 = scmp.eq.s32.totalorder %s22, 3
      %p92 = por %p90, %p91
      %p94 = scmp.ne.s32.totalorder %s79, %s93
      %p95 = scmp.eq.s32.totalorder %s22, 0
      %p96 = por %p94, %p95
      %s98 = sadd.s32 %s97, 1
      %p101 = scmp.eq.s32.totalorder %s16, 3
      %p102 = scmp.ne.s32.totalorder %s97, %s99
      %p103 = scmp.eq.s32.totalorder %s16, 0
      %p104 = por %p102, %p103
      %p105 = scmp.ne.s32.totalorder %s97, %s99
      %p106 = scmp.eq.s32.totalorder %s21, 3
      %p107 = por %p105, %p106
      %p108 = scmp.ne.s32.totalorder %s99, %s100
      %p109 = scmp.eq.s32.totalorder %s21, 0
      %p110 = por %p108, %p109
      %p111 = scmp.ne.s32.totalorder %s99, %s100
      %p112 = scmp.eq.s32.totalorder %s22, 3
      %p113 = por %p111, %p112
      %p115 = scmp.ne.s32.totalorder %s100, %s114
      %p116 = scmp.eq.s32.totalorder %s22, 0
      %p117 = por %p115, %p116
      %s118 = ssub.s32 %s16, %s23
      %p119 = scmp.eq.s32.totalorder %s118, 0
      %s121 = sadd.s32 %s120, 1
      %s122 = scalar_select %p119, %s120, %s121
      %p125 = pneg %p119
      %p126 = scmp.eq.s32.totalorder %s16, 3
      %p127 = por %p125, %p126
      %p128 = scmp.ne.s32.totalorder %s120, %s123
      %p129 = scmp.eq.s32.totalorder %s16, 0
      %p130 = por %p128, %p129
      %p131 = scmp.ne.s32.totalorder %s120, %s123
      %p132 = scmp.eq.s32.totalorder %s21, 3
      %p133 = por %p131, %p132
      %p134 = scmp.ne.s32.totalorder %s123, %s124
      %p135 = scmp.eq.s32.totalorder %s21, 0
      %p136 = por %p134, %p135
      %p137 = scmp.ne.s32.totalorder %s123, %s124
      %p138 = scmp.eq.s32.totalorder %s22, 3
      %p139 = por %p137, %p138
      %p141 = scmp.ne.s32.totalorder %s124, %s140
      %p142 = scmp.eq.s32.totalorder %s22, 0
      %p143 = por %p141, %p142
      %p144 = scmp.le.s32.totalorder 1, %s16
      %p145 = scmp.lt.s32.totalorder %s16, 5
      %p146 = pnand %p144, %p145
      %p147 = pneg %p146
      // Predicated region
      $region9: #{tpu_custom_call.1} parent=5 // pred_check
        _
      $region10: #{tpu_custom_call.1} parent=5 // pred_check_branch
        %149 = sbr.rel (%p146) target = $region12
      $region11: #{tpu_custom_call.1} parent=5 // pred_region
        %s150 = ssub.s32 %s16, 1
        // Predicated region
        $region13: #{tpu_custom_call.1} parent=11 // pred_check
          %p151 = pneg %p89
        $region14: #{tpu_custom_call.1} parent=11 // pred_check_branch
          %153 = sbr.rel (%p151) target = $region16
        $region15: #{tpu_custom_call.1} parent=11 // pred_region
          _
        $region16: #{tpu_custom_call.1} parent=11 // pred_fallthru
          _
        // Predicated region
        $region17: #{tpu_custom_call.1} parent=11 // pred_check
          %p154 = pneg %p110
        $region18: #{tpu_custom_call.1} parent=11 // pred_check_branch
          %156 = sbr.rel (%p154) target = $region20
        $region19: #{tpu_custom_call.1} parent=11 // pred_region
          _
        $region20: #{tpu_custom_call.1} parent=11 // pred_fallthru
          _
      $region12: #{tpu_custom_call.1} parent=5 // pred_fallthru
        _
      %p157 = scmp.lt.s32.totalorder %s16, 4
      // Predicated region
      $region21: #{tpu_custom_call.1} parent=5 // pred_check
        %p158 = pneg %p157
      $region22: #{tpu_custom_call.1} parent=5 // pred_check_branch
        %160 = sbr.rel (%p158) target = $region24
      $region23: #{tpu_custom_call.1} parent=5 // pred_region
        // Predicated region
        $region25: #{tpu_custom_call.1} parent=23 // pred_check
          %p161 = pneg %p36
        $region26: #{tpu_custom_call.1} parent=23 // pred_check_branch
          %163 = sbr.rel (%p161) target = $region28
        $region27: #{tpu_custom_call.1} parent=23 // pred_region
          %s164 = sand.u32 %s26, 1
          %s165 = scalar_lea.sflag [#allocation3], %s164
          %s166 = sand.u32 %s26, 1
          %s167 = smul.addr %s166, 36
          %s168 = scalar_lea.vmem [#allocation2], %s167
          %s170 = ssub.s32 576, 576
          %171 = vsyncadd %s165, %s170
          %s172 = smul.addr %s16, 64
          %s173 = scalar_lea.hbm %s0, %s172
          %s174 = sshll.u32 %s168, 4
          %s175 = int_to_ptr.vmem [resolvable:$true] %s174
          %180 = dma.hbm_to_vmem [thread:$0]  %s173, 576, %s175, %s165, 256, 64, 4
        $region28: #{tpu_custom_call.1} parent=23 // pred_fallthru
          _
        // Predicated region
        $region29: #{tpu_custom_call.1} parent=23 // pred_check
          %p181 = pneg %p62
        $region30: #{tpu_custom_call.1} parent=23 // pred_check_branch
          %183 = sbr.rel (%p181) target = $region32
        $region31: #{tpu_custom_call.1} parent=23 // pred_region
          %s184 = sand.u32 %s52, 1
          %s185 = sand.u32 %s52, 1
          %s186 = smul.addr %s185, 16
          %s187 = scalar_lea.vmem [#allocation5], %s186
          %s188 = smul.addr %s16, 8
          %s189 = scalar_lea.vmem %s1, %s188
          // Predicated region
          $region33: #{tpu_custom_call.1} parent=31 // pred_check
            _
          $region34: #{tpu_custom_call.1} parent=31 // pred_check_branch
            %191 = sbr.rel (0) target = $region36
          $region35: #{tpu_custom_call.1} parent=31 // pred_region
            // Predicated region
            $region37: #{tpu_custom_call.1} parent=35 // pred_check
              _
            $region38: #{tpu_custom_call.1} parent=35 // pred_check_branch
              %193 = sbr.rel (0) target = $region40
            $region39: #{tpu_custom_call.1} parent=35 // pred_region
              // Predicated region
              $region52: #{tpu_custom_call.1} parent=39 // pred_check
                _
              $region53: #{tpu_custom_call.1} parent=39 // pred_check_branch
                %210 = sbr.rel (0) target = $region55
              $region54: #{tpu_custom_call.1} parent=39 // pred_region
                loop: start=0, step=1, limit=1
                $region56: #{tpu_custom_call.1} parent=54 // loop_pre_header
                  _
                $region57: #{tpu_custom_call.1} parent=54 // loop_header
                  %s212 = sphi 0, %s216
                  %p213 = scmp.ge.s32.totalorder %s212, 1
                  %s217 = sphi %s189, %s189
                  %s218 = sphi %s187, %s187
                $region58: #{tpu_custom_call.1} parent=54 // loop_header_branch
                  %215 = sbr.rel (%p213) target = $region62
                $region59: #{tpu_custom_call.1} parent=54 // loop_body
                  %v219 = vld [vmem:[%s217] sm:$0xff]
                  %220 = vst [vmem:[%s218] sm:$0xff] %v219
                  %v221 = vld [vmem:[%s217 + $0x20] sm:$0xff]
                  %222 = vst [vmem:[%s218 + $0x8] sm:$0xff] %v221
                $region60: #{tpu_custom_call.1} parent=54 // loop_footer
                  %s216 = sadd.s32 1, %s212
                $region61: #{tpu_custom_call.1} parent=54 // loop_footer_branch
                  %211 = sbr.rel target = $region57
                $region62: #{tpu_custom_call.1} parent=54 // loop_exit
                  _
              $region55: #{tpu_custom_call.1} parent=39 // pred_fallthru
                _
              // Predicated region
              $region63: #{tpu_custom_call.1} parent=39 // pred_check
                _
              $region64: #{tpu_custom_call.1} parent=39 // pred_check_branch
                %224 = sbr.rel target = $region66
              $region65: #{tpu_custom_call.1} parent=39 // pred_region
                _
              $region66: #{tpu_custom_call.1} parent=39 // pred_fallthru
                _
            $region40: #{tpu_custom_call.1} parent=35 // pred_fallthru
              _
            // Predicated region
            $region41: #{tpu_custom_call.1} parent=35 // pred_check
              _
            $region42: #{tpu_custom_call.1} parent=35 // pred_check_branch
              %195 = sbr.rel target = $region44
            $region43: #{tpu_custom_call.1} parent=35 // pred_region
              loop: start=0, step=1, limit=1
              $region45: #{tpu_custom_call.1} parent=43 // loop_pre_header
                _
              $region46: #{tpu_custom_call.1} parent=43 // loop_header
                %s198 = sphi 0, %s202
                %p199 = scmp.ge.s32.totalorder %s198, 1
                %s203 = sphi %s189, %s189
                %s204 = sphi %s187, %s187
              $region47: #{tpu_custom_call.1} parent=43 // loop_header_branch
                %201 = sbr.rel (%p199) target = $region51
              $region48: #{tpu_custom_call.1} parent=43 // loop_body
                %v205 = vld [vmem:[%s203] sm:$0xff]
                %206 = vst [vmem:[%s204] sm:$0xff] %v205
                %v207 = vld [vmem:[%s203 + $0x20] sm:$0xff]
                %208 = vst [vmem:[%s204 + $0x8] sm:$0xff] %v207
              $region49: #{tpu_custom_call.1} parent=43 // loop_footer
                %s202 = sadd.s32 1, %s198
              $region50: #{tpu_custom_call.1} parent=43 // loop_footer_branch
                %197 = sbr.rel target = $region46
              $region51: #{tpu_custom_call.1} parent=43 // loop_exit
                _
            $region44: #{tpu_custom_call.1} parent=35 // pred_fallthru
              _
          $region36: #{tpu_custom_call.1} parent=31 // pred_fallthru
            _
          %225 = vnop
        $region32: #{tpu_custom_call.1} parent=23 // pred_fallthru
          _
      $region24: #{tpu_custom_call.1} parent=5 // pred_fallthru
        _
      %p226 = scmp.le.s32.totalorder 1, %s16
      %p227 = scmp.lt.s32.totalorder %s16, 5
      %p228 = pnand %p226, %p227
      %p229 = pneg %p228
      // Predicated region
      $region67: #{tpu_custom_call.1} parent=5 // pred_check
        _
      $region68: #{tpu_custom_call.1} parent=5 // pred_check_branch
        %231 = sbr.rel (%p228) target = $region70
      $region69: #{tpu_custom_call.1} parent=5 // pred_region
        %s232 = ssub.s32 %s16, 1
        %s233 = sand.u32 %s29, 1
        %s234 = scalar_lea.sflag [#allocation3], %s233
        %s235 = sand.u32 %s29, 1
        %s236 = smul.addr %s235, 36
        %s237 = scalar_lea.vmem [#allocation2], %s236
        // Predicated region
        $region71: #{tpu_custom_call.1} parent=69 // pred_check
          %p238 = pneg %p42
        $region72: #{tpu_custom_call.1} parent=69 // pred_check_branch
          %240 = sbr.rel (%p238) target = $region74
        $region73: #{tpu_custom_call.1} parent=69 // pred_region
          %241 = dma.done %s234, 576
        $region74: #{tpu_custom_call.1} parent=69 // pred_fallthru
          _
        %s242 = sand.u32 %s55, 1
        %s243 = sand.u32 %s55, 1
        %s244 = smul.addr %s243, 16
        %s245 = scalar_lea.vmem [#allocation5], %s244
        // Predicated region
        $region75: #{tpu_custom_call.1} parent=69 // pred_check
          %p246 = pneg %p68
        $region76: #{tpu_custom_call.1} parent=69 // pred_check_branch
          %248 = sbr.rel (%p246) target = $region78
        $region77: #{tpu_custom_call.1} parent=69 // pred_region
          _
        $region78: #{tpu_custom_call.1} parent=69 // pred_fallthru
          _
        %s249 = sand.u32 %s29, 1
        %s250 = scalar_lea.sflag [#allocation3], %s249
        %s251 = sand.u32 %s29, 1
        %s252 = smul.addr %s251, 36
        %s253 = scalar_lea.vmem [#allocation2], %s252
        %p254 = pneg %p42
        %p255 = pneg %p39
        %s256 = sand.u32 %s55, 1
        %s257 = sand.u32 %s55, 1
        %s258 = smul.addr %s257, 16
        %s259 = scalar_lea.vmem [#allocation5], %s258
        %p260 = pneg %p68
        %p261 = pneg %p65
        %p262 = pneg %p89
        %p263 = pneg %p86
        %p264 = pneg %p110
        %p265 = pneg %p107
        %p266 = pneg %p136
        %p267 = pneg %p133
        %s268 = sand.u32 %s123, 1
        %s269 = scalar_lea.sflag [#allocation4], %s268
        %s270 = sand.u32 %s123, 1
        %s271 = smul.addr %s270, 8
        %s272 = scalar_lea.vmem [#allocation6], %s271
        %v273 = vld [vmem:[%s245] sm:$0xff]
        %v274 = vld [vmem:[%s245 + $0x8] sm:$0x1]
        %v275 = vlaneseq
        %v276 = vshrl.u32 %v275, 7
        %v277 = vsub.s32 4, %v276
        %v278 = vrot.slane %v273, %v277
        %v279 = vsub.f32 %v278, %v273
        %v280 = vsub.f32 %v278, %v274
        %v281 = vand.u32 2147483647, %v279
        %v282 = vand.u32 2147483647, %v280
        %v283 = vmul.f32 %v281, -8.3
        %v284 = vmul.f32 %v282, -8.3
        %v285 = vmul.f32 %v283, 1.442695
        %v286 = vpow.pop %v285
        %v287 = vmul.f32 %v284, 1.442695
        %v288 = vpow.pop %v287
        %v289 = vld [vmem:[%s237] sm:$0xf]
        %v290 = vld [vmem:[%s2] sm:$0xff]
        %v291 = vlaneseq
        %v292 = vshrl.u32 %v291, 7
        %v293 = vsub.s32 0, %v292
        %v294 = vrot.slane %v286, %v293
        %v295 = vmul.f32 %v289, %v294
        %s296 = scalar_lea.vmem %s237, 4 [#allocation2]
        %v297 = vld [vmem:[%s296] sm:$0xf]
        %s298 = scalar_lea.vmem %s2, 8
        %v299 = vld [vmem:[%s298] sm:$0xff]
        %v300 = vlaneseq
        %v301 = vshrl.u32 %v300, 7
        %v302 = vsub.s32 1, %v301
        %v303 = vrot.slane %v286, %v302
        %v304 = vmul.f32 %v297, %v303
        %vm305 = vcmask 31744
        %v307 = vsel %vm305, %v299, 0
        %vm309 = vcmask 1043456
        %v311 = vsel %vm309, %v304, 0
        %313 = vmatprep.subr.mxu0 0.0
        %314 = vmatpush1.msra.mxu0 %v311
        %315 = vmatprep.subr.mxu0 0.0
        %316 = vmatpush1.msra.mxu0 0.0
        %317 = vmatprep.subr.mxu0 0.0
        %318 = vmatpush1.msra.mxu0 0.0
        %319 = vmatprep.subr.mxu0 0.0
        %320 = vmatpush1.msra.mxu0 0.0
        %321 = vmatprep.subr.mxu0 0.0
        %322 = vmatpush1.msra.mxu0 0.0
        %323 = vmatprep.subr.mxu0 0.0
        %324 = vmatpush1.msra.mxu0 0.0
        %325 = vmatprep.subr.mxu0 0.0
        %326 = vmatpush1.msra.mxu0 0.0
        %327 = vmatprep.subr.mxu0 0.0
        %328 = vmatpush1.msra.mxu0 0.0
        %329 = vmatprep.subr.mxu0 0.0
        %330 = vmatpush1.msra.mxu0 0.0
        %331 = vmatprep.subr.mxu0 0.0
        %332 = vmatpush1.msra.mxu0 0.0
        %333 = vmatprep.subr.mxu0 0.0
        %334 = vmatpush1.msra.mxu0 0.0
        %335 = vmatprep.subr.mxu0 0.0
        %336 = vmatpush1.msra.mxu0 0.0
        %337 = vmatprep.subr.mxu0 0.0
        %338 = vmatpush1.msra.mxu0 0.0
        %339 = vmatprep.subr.mxu0 0.0
        %340 = vmatpush1.msra.mxu0 0.0
        %341 = vmatprep.subr.mxu0 0.0
        %342 = vmatpush1.msra.mxu0 0.0
        %343 = vmatprep.subr.mxu0 0.0
        %344 = vmatpush1.msra.mxu0 0.0
        %345 = vmatprep.subr.mxu0 0.0
        %346 = vmatpush1.msra.mxu0 0.0
        %347 = vmatprep.subr.mxu0 0.0
        %348 = vmatpush1.msra.mxu0 0.0
        %349 = vmatprep.subr.mxu0 0.0
        %350 = vmatpush1.msra.mxu0 0.0
        %351 = vmatprep.subr.mxu0 0.0
        %352 = vmatpush1.msra.mxu0 0.0
        %353 = vmatprep.subr.mxu0 0.0
        %354 = vmatpush1.msra.mxu0 0.0
        %355 = vmatprep.subr.mxu0 0.0
        %356 = vmatpush1.msra.mxu0 0.0
        %357 = vmatprep.subr.mxu0 0.0
        %358 = vmatpush1.msra.mxu0 0.0
        %359 = vmatprep.subr.mxu0 0.0
        %360 = vmatpush1.msra.mxu0 0.0
        %361 = vmatprep.subr.mxu0 0.0
        %362 = vmatpush1.msra.mxu0 0.0
        %363 = vmatprep.subr.mxu0 0.0
        %364 = vmatpush1.msra.mxu0 0.0
        %365 = vmatprep.subr.mxu0 0.0
        %366 = vmatpush1.msra.mxu0 0.0
        %367 = vmatprep.subr.mxu0 0.0
        %368 = vmatpush1.msra.mxu0 0.0
        %369 = vmatprep.subr.mxu0 0.0
        %370 = vmatpush1.msra.mxu0 0.0
        %371 = vmatprep.subr.mxu0 0.0
        %372 = vmatpush1.msra.mxu0 0.0
        %373 = vmatprep.subr.mxu0 0.0
        %374 = vmatpush1.msra.mxu0 0.0
        %375 = vmatprep.subr.mxu0 0.0
        %376 = vmatpush1.msra.mxu0 0.0
        %377 = vmatprep.mubr.f32.mxu0 0.0
        %378 = vmatmul.mubr.f32.gmra.mrb[0].mxu0 %v307
        %v379 = vpop.f32.mrb[0].mxu0
        %v380 = vadd.f32 0.0, %v379
        %v381 = vpop.f32.mrb[0].mxu0
        %382 = vdwg.mxu0
        %v384 = vsel %vm305, %v290, 0
        %v387 = vsel %vm309, %v295, 0
        %389 = vmatprep.subr.mxu0 0.0
        %390 = vmatpush1.msra.mxu0 %v387
        %391 = vmatprep.subr.mxu0 0.0
        %392 = vmatpush1.msra.mxu0 0.0
        %393 = vmatprep.subr.mxu0 0.0
        %394 = vmatpush1.msra.mxu0 0.0
        %395 = vmatprep.subr.mxu0 0.0
        %396 = vmatpush1.msra.mxu0 0.0
        %397 = vmatprep.subr.mxu0 0.0
        %398 = vmatpush1.msra.mxu0 0.0
        %399 = vmatprep.subr.mxu0 0.0
        %400 = vmatpush1.msra.mxu0 0.0
        %401 = vmatprep.subr.mxu0 0.0
        %402 = vmatpush1.msra.mxu0 0.0
        %403 = vmatprep.subr.mxu0 0.0
        %404 = vmatpush1.msra.mxu0 0.0
        %405 = vmatprep.subr.mxu0 0.0
        %406 = vmatpush1.msra.mxu0 0.0
        %407 = vmatprep.subr.mxu0 0.0
        %408 = vmatpush1.msra.mxu0 0.0
        %409 = vmatprep.subr.mxu0 0.0
        %410 = vmatpush1.msra.mxu0 0.0
        %411 = vmatprep.subr.mxu0 0.0
        %412 = vmatpush1.msra.mxu0 0.0
        %413 = vmatprep.subr.mxu0 0.0
        %414 = vmatpush1.msra.mxu0 0.0
        %415 = vmatprep.subr.mxu0 0.0
        %416 = vmatpush1.msra.mxu0 0.0
        %417 = vmatprep.subr.mxu0 0.0
        %418 = vmatpush1.msra.mxu0 0.0
        %419 = vmatprep.subr.mxu0 0.0
        %420 = vmatpush1.msra.mxu0 0.0
        %421 = vmatprep.subr.mxu0 0.0
        %422 = vmatpush1.msra.mxu0 0.0
        %423 = vmatprep.subr.mxu0 0.0
        %424 = vmatpush1.msra.mxu0 0.0
        %425 = vmatprep.subr.mxu0 0.0
        %426 = vmatpush1.msra.mxu0 0.0
        %427 = vmatprep.subr.mxu0 0.0
        %428 = vmatpush1.msra.mxu0 0.0
        %429 = vmatprep.subr.mxu0 0.0
        %430 = vmatpush1.msra.mxu0 0.0
        %431 = vmatprep.subr.mxu0 0.0
        %432 = vmatpush1.msra.mxu0 0.0
        %433 = vmatprep.subr.mxu0 0.0
        %434 = vmatpush1.msra.mxu0 0.0
        %435 = vmatprep.subr.mxu0 0.0
        %436 = vmatpush1.msra.mxu0 0.0
        %437 = vmatprep.subr.mxu0 0.0
        %438 = vmatpush1.msra.mxu0 0.0
        %439 = vmatprep.subr.mxu0 0.0
        %440 = vmatpush1.msra.mxu0 0.0
        %441 = vmatprep.subr.mxu0 0.0
        %442 = vmatpush1.msra.mxu0 0.0
        %443 = vmatprep.subr.mxu0 0.0
        %444 = vmatpush1.msra.mxu0 0.0
        %445 = vmatprep.subr.mxu0 0.0
        %446 = vmatpush1.msra.mxu0 0.0
        %447 = vmatprep.subr.mxu0 0.0
        %448 = vmatpush1.msra.mxu0 0.0
        %449 = vmatprep.subr.mxu0 0.0
        %450 = vmatpush1.msra.mxu0 0.0
        %451 = vmatprep.subr.mxu0 0.0
        %452 = vmatpush1.msra.mxu0 0.0
        %453 = vmatprep.mubr.f32.mxu0 0.0
        %454 = vmatmul.mubr.f32.gmra.mrb[0].mxu0 %v384
        %v455 = vpop.f32.mrb[0].mxu0
        %v456 = vadd.f32 %v380, %v455
        %v457 = vpop.f32.mrb[0].mxu0
        %458 = vdwg.mxu0
        %s459 = scalar_lea.vmem %s237, 8 [#allocation2]
        %v460 = vld [vmem:[%s459] sm:$0xf]
        %s461 = scalar_lea.vmem %s2, 16
        %v462 = vld [vmem:[%s461] sm:$0xff]
        %v463 = vlaneseq
        %v464 = vshrl.u32 %v463, 7
        %v465 = vsub.s32 2, %v464
        %v466 = vrot.slane %v286, %v465
        %v467 = vmul.f32 %v460, %v466
        %v469 = vsel %vm305, %v462, 0
        %v472 = vsel %vm309, %v467, 0
        %474 = vmatprep.subr.mxu0 0.0
        %475 = vmatpush1.msra.mxu0 %v472
        %476 = vmatprep.subr.mxu0 0.0
        %477 = vmatpush1.msra.mxu0 0.0
        %478 = vmatprep.subr.mxu0 0.0
        %479 = vmatpush1.msra.mxu0 0.0
        %480 = vmatprep.subr.mxu0 0.0
        %481 = vmatpush1.msra.mxu0 0.0
        %482 = vmatprep.subr.mxu0 0.0
        %483 = vmatpush1.msra.mxu0 0.0
        %484 = vmatprep.subr.mxu0 0.0
        %485 = vmatpush1.msra.mxu0 0.0
        %486 = vmatprep.subr.mxu0 0.0
        %487 = vmatpush1.msra.mxu0 0.0
        %488 = vmatprep.subr.mxu0 0.0
        %489 = vmatpush1.msra.mxu0 0.0
        %490 = vmatprep.subr.mxu0 0.0
        %491 = vmatpush1.msra.mxu0 0.0
        %492 = vmatprep.subr.mxu0 0.0
        %493 = vmatpush1.msra.mxu0 0.0
        %494 = vmatprep.subr.mxu0 0.0
        %495 = vmatpush1.msra.mxu0 0.0
        %496 = vmatprep.subr.mxu0 0.0
        %497 = vmatpush1.msra.mxu0 0.0
        %498 = vmatprep.subr.mxu0 0.0
        %499 = vmatpush1.msra.mxu0 0.0
        %500 = vmatprep.subr.mxu0 0.0
        %501 = vmatpush1.msra.mxu0 0.0
        %502 = vmatprep.subr.mxu0 0.0
        %503 = vmatpush1.msra.mxu0 0.0
        %504 = vmatprep.subr.mxu0 0.0
        %505 = vmatpush1.msra.mxu0 0.0
        %506 = vmatprep.subr.mxu0 0.0
        %507 = vmatpush1.msra.mxu0 0.0
        %508 = vmatprep.subr.mxu0 0.0
        %509 = vmatpush1.msra.mxu0 0.0
        %510 = vmatprep.subr.mxu0 0.0
        %511 = vmatpush1.msra.mxu0 0.0
        %512 = vmatprep.subr.mxu0 0.0
        %513 = vmatpush1.msra.mxu0 0.0
        %514 = vmatprep.subr.mxu0 0.0
        %515 = vmatpush1.msra.mxu0 0.0
        %516 = vmatprep.subr.mxu0 0.0
        %517 = vmatpush1.msra.mxu0 0.0
        %518 = vmatprep.subr.mxu0 0.0
        %519 = vmatpush1.msra.mxu0 0.0
        %520 = vmatprep.subr.mxu0 0.0
        %521 = vmatpush1.msra.mxu0 0.0
        %522 = vmatprep.subr.mxu0 0.0
        %523 = vmatpush1.msra.mxu0 0.0
        %524 = vmatprep.subr.mxu0 0.0
        %525 = vmatpush1.msra.mxu0 0.0
        %526 = vmatprep.subr.mxu0 0.0
        %527 = vmatpush1.msra.mxu0 0.0
        %528 = vmatprep.subr.mxu0 0.0
        %529 = vmatpush1.msra.mxu0 0.0
        %530 = vmatprep.subr.mxu0 0.0
        %531 = vmatpush1.msra.mxu0 0.0
        %532 = vmatprep.subr.mxu0 0.0
        %533 = vmatpush1.msra.mxu0 0.0
        %534 = vmatprep.subr.mxu0 0.0
        %535 = vmatpush1.msra.mxu0 0.0
        %536 = vmatprep.subr.mxu0 0.0
        %537 = vmatpush1.msra.mxu0 0.0
        %538 = vmatprep.mubr.f32.mxu0 0.0
        %539 = vmatmul.mubr.f32.gmra.mrb[0].mxu0 %v469
        %v540 = vpop.f32.mrb[0].mxu0
        %v541 = vadd.f32 0.0, %v540
        %v542 = vpop.f32.mrb[0].mxu0
        %543 = vdwg.mxu0
        %v544 = vadd.f32 %v456, %v541
        %s545 = scalar_lea.vmem %s237, 12 [#allocation2]
        %v546 = vld [vmem:[%s545] sm:$0xf]
        %s547 = scalar_lea.vmem %s2, 24
        %v548 = vld [vmem:[%s547] sm:$0xff]
        %v549 = vlaneseq
        %v550 = vshrl.u32 %v549, 7
        %v551 = vsub.s32 3, %v550
        %v552 = vrot.slane %v286, %v551
        %v553 = vmul.f32 %v546, %v552
        %v555 = vsel %vm305, %v548, 0
        %v558 = vsel %vm309, %v553, 0
        %560 = vmatprep.subr.mxu0 0.0
        %561 = vmatpush1.msra.mxu0 %v558
        %562 = vmatprep.subr.mxu0 0.0
        %563 = vmatpush1.msra.mxu0 0.0
        %564 = vmatprep.subr.mxu0 0.0
        %565 = vmatpush1.msra.mxu0 0.0
        %566 = vmatprep.subr.mxu0 0.0
        %567 = vmatpush1.msra.mxu0 0.0
        %568 = vmatprep.subr.mxu0 0.0
        %569 = vmatpush1.msra.mxu0 0.0
        %570 = vmatprep.subr.mxu0 0.0
        %571 = vmatpush1.msra.mxu0 0.0
        %572 = vmatprep.subr.mxu0 0.0
        %573 = vmatpush1.msra.mxu0 0.0
        %574 = vmatprep.subr.mxu0 0.0
        %575 = vmatpush1.msra.mxu0 0.0
        %576 = vmatprep.subr.mxu0 0.0
        %577 = vmatpush1.msra.mxu0 0.0
        %578 = vmatprep.subr.mxu0 0.0
        %579 = vmatpush1.msra.mxu0 0.0
        %580 = vmatprep.subr.mxu0 0.0
        %581 = vmatpush1.msra.mxu0 0.0
        %582 = vmatprep.subr.mxu0 0.0
        %583 = vmatpush1.msra.mxu0 0.0
        %584 = vmatprep.subr.mxu0 0.0
        %585 = vmatpush1.msra.mxu0 0.0
        %586 = vmatprep.subr.mxu0 0.0
        %587 = vmatpush1.msra.mxu0 0.0
        %588 = vmatprep.subr.mxu0 0.0
        %589 = vmatpush1.msra.mxu0 0.0
        %590 = vmatprep.subr.mxu0 0.0
        %591 = vmatpush1.msra.mxu0 0.0
        %592 = vmatprep.subr.mxu0 0.0
        %593 = vmatpush1.msra.mxu0 0.0
        %594 = vmatprep.subr.mxu0 0.0
        %595 = vmatpush1.msra.mxu0 0.0
        %596 = vmatprep.subr.mxu0 0.0
        %597 = vmatpush1.msra.mxu0 0.0
        %598 = vmatprep.subr.mxu0 0.0
        %599 = vmatpush1.msra.mxu0 0.0
        %600 = vmatprep.subr.mxu0 0.0
        %601 = vmatpush1.msra.mxu0 0.0
        %602 = vmatprep.subr.mxu0 0.0
        %603 = vmatpush1.msra.mxu0 0.0
        %604 = vmatprep.subr.mxu0 0.0
        %605 = vmatpush1.msra.mxu0 0.0
        %606 = vmatprep.subr.mxu0 0.0
        %607 = vmatpush1.msra.mxu0 0.0
        %608 = vmatprep.subr.mxu0 0.0
        %609 = vmatpush1.msra.mxu0 0.0
        %610 = vmatprep.subr.mxu0 0.0
        %611 = vmatpush1.msra.mxu0 0.0
        %612 = vmatprep.subr.mxu0 0.0
        %613 = vmatpush1.msra.mxu0 0.0
        %614 = vmatprep.subr.mxu0 0.0
        %615 = vmatpush1.msra.mxu0 0.0
        %616 = vmatprep.subr.mxu0 0.0
        %617 = vmatpush1.msra.mxu0 0.0
        %618 = vmatprep.subr.mxu0 0.0
        %619 = vmatpush1.msra.mxu0 0.0
        %620 = vmatprep.subr.mxu0 0.0
        %621 = vmatpush1.msra.mxu0 0.0
        %622 = vmatprep.subr.mxu0 0.0
        %623 = vmatpush1.msra.mxu0 0.0
        %624 = vmatprep.mubr.f32.mxu0 0.0
        %625 = vmatmul.mubr.f32.gmra.mrb[0].mxu0 %v555
        %v626 = vpop.f32.mrb[0].mxu0
        %v627 = vadd.f32 0.0, %v626
        %v628 = vpop.f32.mrb[0].mxu0
        %629 = vdwg.mxu0
        %v630 = vadd.f32 %v544, %v627
        %s631 = scalar_lea.vmem %s237, 16 [#allocation2]
        %v632 = vld [vmem:[%s631] sm:$0xf]
        %s633 = scalar_lea.vmem %s2, 32
        %v634 = vld [vmem:[%s633] sm:$0xff]
        %v635 = vlaneseq
        %v636 = vshrl.u32 %v635, 7
        %v637 = vsub.s32 4, %v636
        %v638 = vrot.slane %v286, %v637
        %v639 = vmul.f32 %v632, %v638
        %v641 = vsel %vm305, %v634, 0
        %v644 = vsel %vm309, %v639, 0
        %646 = vmatprep.subr.mxu0 0.0
        %647 = vmatpush1.msra.mxu0 %v644
        %648 = vmatprep.subr.mxu0 0.0
        %649 = vmatpush1.msra.mxu0 0.0
        %650 = vmatprep.subr.mxu0 0.0
        %651 = vmatpush1.msra.mxu0 0.0
        %652 = vmatprep.subr.mxu0 0.0
        %653 = vmatpush1.msra.mxu0 0.0
        %654 = vmatprep.subr.mxu0 0.0
        %655 = vmatpush1.msra.mxu0 0.0
        %656 = vmatprep.subr.mxu0 0.0
        %657 = vmatpush1.msra.mxu0 0.0
        %658 = vmatprep.subr.mxu0 0.0
        %659 = vmatpush1.msra.mxu0 0.0
        %660 = vmatprep.subr.mxu0 0.0
        %661 = vmatpush1.msra.mxu0 0.0
        %662 = vmatprep.subr.mxu0 0.0
        %663 = vmatpush1.msra.mxu0 0.0
        %664 = vmatprep.subr.mxu0 0.0
        %665 = vmatpush1.msra.mxu0 0.0
        %666 = vmatprep.subr.mxu0 0.0
        %667 = vmatpush1.msra.mxu0 0.0
        %668 = vmatprep.subr.mxu0 0.0
        %669 = vmatpush1.msra.mxu0 0.0
        %670 = vmatprep.subr.mxu0 0.0
        %671 = vmatpush1.msra.mxu0 0.0
        %672 = vmatprep.subr.mxu0 0.0
        %673 = vmatpush1.msra.mxu0 0.0
        %674 = vmatprep.subr.mxu0 0.0
        %675 = vmatpush1.msra.mxu0 0.0
        %676 = vmatprep.subr.mxu0 0.0
        %677 = vmatpush1.msra.mxu0 0.0
        %678 = vmatprep.subr.mxu0 0.0
        %679 = vmatpush1.msra.mxu0 0.0
        %680 = vmatprep.subr.mxu0 0.0
        %681 = vmatpush1.msra.mxu0 0.0
        %682 = vmatprep.subr.mxu0 0.0
        %683 = vmatpush1.msra.mxu0 0.0
        %684 = vmatprep.subr.mxu0 0.0
        %685 = vmatpush1.msra.mxu0 0.0
        %686 = vmatprep.subr.mxu0 0.0
        %687 = vmatpush1.msra.mxu0 0.0
        %688 = vmatprep.subr.mxu0 0.0
        %689 = vmatpush1.msra.mxu0 0.0
        %690 = vmatprep.subr.mxu0 0.0
        %691 = vmatpush1.msra.mxu0 0.0
        %692 = vmatprep.subr.mxu0 0.0
        %693 = vmatpush1.msra.mxu0 0.0
        %694 = vmatprep.subr.mxu0 0.0
        %695 = vmatpush1.msra.mxu0 0.0
        %696 = vmatprep.subr.mxu0 0.0
        %697 = vmatpush1.msra.mxu0 0.0
        %698 = vmatprep.subr.mxu0 0.0
        %699 = vmatpush1.msra.mxu0 0.0
        %700 = vmatprep.subr.mxu0 0.0
        %701 = vmatpush1.msra.mxu0 0.0
        %702 = vmatprep.subr.mxu0 0.0
        %703 = vmatpush1.msra.mxu0 0.0
        %704 = vmatprep.subr.mxu0 0.0
        %705 = vmatpush1.msra.mxu0 0.0
        %706 = vmatprep.subr.mxu0 0.0
        %707 = vmatpush1.msra.mxu0 0.0
        %708 = vmatprep.subr.mxu0 0.0
        %709 = vmatpush1.msra.mxu0 0.0
        %710 = vmatprep.mubr.f32.mxu0 0.0
        %711 = vmatmul.mubr.f32.gmra.mrb[0].mxu0 %v641
        %v712 = vpop.f32.mrb[0].mxu0
        %v713 = vadd.f32 0.0, %v712
        %v714 = vpop.f32.mrb[0].mxu0
        %715 = vdwg.mxu0
        %v716 = vadd.f32 %v630, %v713
        %s717 = scalar_lea.vmem %s237, 20 [#allocation2]
        %v718 = vld [vmem:[%s717] sm:$0xf]
        %s719 = scalar_lea.vmem %s2, 40
        %v720 = vld [vmem:[%s719] sm:$0xff]
        %v721 = vlaneseq
        %v722 = vshrl.u32 %v721, 7
        %v723 = vsub.s32 5, %v722
        %v724 = vrot.slane %v286, %v723
        %v725 = vmul.f32 %v718, %v724
        %v727 = vsel %vm305, %v720, 0
        %v730 = vsel %vm309, %v725, 0
        %732 = vmatprep.subr.mxu0 0.0
        %733 = vmatpush1.msra.mxu0 %v730
        %734 = vmatprep.subr.mxu0 0.0
        %735 = vmatpush1.msra.mxu0 0.0
        %736 = vmatprep.subr.mxu0 0.0
        %737 = vmatpush1.msra.mxu0 0.0
        %738 = vmatprep.subr.mxu0 0.0
        %739 = vmatpush1.msra.mxu0 0.0
        %740 = vmatprep.subr.mxu0 0.0
        %741 = vmatpush1.msra.mxu0 0.0
        %742 = vmatprep.subr.mxu0 0.0
        %743 = vmatpush1.msra.mxu0 0.0
        %744 = vmatprep.subr.mxu0 0.0
        %745 = vmatpush1.msra.mxu0 0.0
        %746 = vmatprep.subr.mxu0 0.0
        %747 = vmatpush1.msra.mxu0 0.0
        %748 = vmatprep.subr.mxu0 0.0
        %749 = vmatpush1.msra.mxu0 0.0
        %750 = vmatprep.subr.mxu0 0.0
        %751 = vmatpush1.msra.mxu0 0.0
        %752 = vmatprep.subr.mxu0 0.0
        %753 = vmatpush1.msra.mxu0 0.0
        %754 = vmatprep.subr.mxu0 0.0
        %755 = vmatpush1.msra.mxu0 0.0
        %756 = vmatprep.subr.mxu0 0.0
        %757 = vmatpush1.msra.mxu0 0.0
        %758 = vmatprep.subr.mxu0 0.0
        %759 = vmatpush1.msra.mxu0 0.0
        %760 = vmatprep.subr.mxu0 0.0
        %761 = vmatpush1.msra.mxu0 0.0
        %762 = vmatprep.subr.mxu0 0.0
        %763 = vmatpush1.msra.mxu0 0.0
        %764 = vmatprep.subr.mxu0 0.0
        %765 = vmatpush1.msra.mxu0 0.0
        %766 = vmatprep.subr.mxu0 0.0
        %767 = vmatpush1.msra.mxu0 0.0
        %768 = vmatprep.subr.mxu0 0.0
        %769 = vmatpush1.msra.mxu0 0.0
        %770 = vmatprep.subr.mxu0 0.0
        %771 = vmatpush1.msra.mxu0 0.0
        %772 = vmatprep.subr.mxu0 0.0
        %773 = vmatpush1.msra.mxu0 0.0
        %774 = vmatprep.subr.mxu0 0.0
        %775 = vmatpush1.msra.mxu0 0.0
        %776 = vmatprep.subr.mxu0 0.0
        %777 = vmatpush1.msra.mxu0 0.0
        %778 = vmatprep.subr.mxu0 0.0
        %779 = vmatpush1.msra.mxu0 0.0
        %780 = vmatprep.subr.mxu0 0.0
        %781 = vmatpush1.msra.mxu0 0.0
        %782 = vmatprep.subr.mxu0 0.0
        %783 = vmatpush1.msra.mxu0 0.0
        %784 = vmatprep.subr.mxu0 0.0
        %785 = vmatpush1.msra.mxu0 0.0
        %786 = vmatprep.subr.mxu0 0.0
        %787 = vmatpush1.msra.mxu0 0.0
        %788 = vmatprep.subr.mxu0 0.0
        %789 = vmatpush1.msra.mxu0 0.0
        %790 = vmatprep.subr.mxu0 0.0
        %791 = vmatpush1.msra.mxu0 0.0
        %792 = vmatprep.subr.mxu0 0.0
        %793 = vmatpush1.msra.mxu0 0.0
        %794 = vmatprep.subr.mxu0 0.0
        %795 = vmatpush1.msra.mxu0 0.0
        %796 = vmatprep.mubr.f32.mxu0 0.0
        %797 = vmatmul.mubr.f32.gmra.mrb[0].mxu0 %v727
        %v798 = vpop.f32.mrb[0].mxu0
        %v799 = vadd.f32 0.0, %v798
        %v800 = vpop.f32.mrb[0].mxu0
        %801 = vdwg.mxu0
        %v802 = vadd.f32 %v716, %v799
        %s803 = scalar_lea.vmem %s237, 24 [#allocation2]
        %v804 = vld [vmem:[%s803] sm:$0xf]
        %s805 = scalar_lea.vmem %s2, 48
        %v806 = vld [vmem:[%s805] sm:$0xff]
        %v807 = vlaneseq
        %v808 = vshrl.u32 %v807, 7
        %v809 = vsub.s32 6, %v808
        %v810 = vrot.slane %v286, %v809
        %v811 = vmul.f32 %v804, %v810
        %v813 = vsel %vm305, %v806, 0
        %v816 = vsel %vm309, %v811, 0
        %818 = vmatprep.subr.mxu0 0.0
        %819 = vmatpush1.msra.mxu0 %v816
        %820 = vmatprep.subr.mxu0 0.0
        %821 = vmatpush1.msra.mxu0 0.0
        %822 = vmatprep.subr.mxu0 0.0
        %823 = vmatpush1.msra.mxu0 0.0
        %824 = vmatprep.subr.mxu0 0.0
        %825 = vmatpush1.msra.mxu0 0.0
        %826 = vmatprep.subr.mxu0 0.0
        %827 = vmatpush1.msra.mxu0 0.0
        %828 = vmatprep.subr.mxu0 0.0
        %829 = vmatpush1.msra.mxu0 0.0
        %830 = vmatprep.subr.mxu0 0.0
        %831 = vmatpush1.msra.mxu0 0.0
        %832 = vmatprep.subr.mxu0 0.0
        %833 = vmatpush1.msra.mxu0 0.0
        %834 = vmatprep.subr.mxu0 0.0
        %835 = vmatpush1.msra.mxu0 0.0
        %836 = vmatprep.subr.mxu0 0.0
        %837 = vmatpush1.msra.mxu0 0.0
        %838 = vmatprep.subr.mxu0 0.0
        %839 = vmatpush1.msra.mxu0 0.0
        %840 = vmatprep.subr.mxu0 0.0
        %841 = vmatpush1.msra.mxu0 0.0
        %842 = vmatprep.subr.mxu0 0.0
        %843 = vmatpush1.msra.mxu0 0.0
        %844 = vmatprep.subr.mxu0 0.0
        %845 = vmatpush1.msra.mxu0 0.0
        %846 = vmatprep.subr.mxu0 0.0
        %847 = vmatpush1.msra.mxu0 0.0
        %848 = vmatprep.subr.mxu0 0.0
        %849 = vmatpush1.msra.mxu0 0.0
        %850 = vmatprep.subr.mxu0 0.0
        %851 = vmatpush1.msra.mxu0 0.0
        %852 = vmatprep.subr.mxu0 0.0
        %853 = vmatpush1.msra.mxu0 0.0
        %854 = vmatprep.subr.mxu0 0.0
        %855 = vmatpush1.msra.mxu0 0.0
        %856 = vmatprep.subr.mxu0 0.0
        %857 = vmatpush1.msra.mxu0 0.0
        %858 = vmatprep.subr.mxu0 0.0
        %859 = vmatpush1.msra.mxu0 0.0
        %860 = vmatprep.subr.mxu0 0.0
        %861 = vmatpush1.msra.mxu0 0.0
        %862 = vmatprep.subr.mxu0 0.0
        %863 = vmatpush1.msra.mxu0 0.0
        %864 = vmatprep.subr.mxu0 0.0
        %865 = vmatpush1.msra.mxu0 0.0
        %866 = vmatprep.subr.mxu0 0.0
        %867 = vmatpush1.msra.mxu0 0.0
        %868 = vmatprep.subr.mxu0 0.0
        %869 = vmatpush1.msra.mxu0 0.0
        %870 = vmatprep.subr.mxu0 0.0
        %871 = vmatpush1.msra.mxu0 0.0
        %872 = vmatprep.subr.mxu0 0.0
        %873 = vmatpush1.msra.mxu0 0.0
        %874 = vmatprep.subr.mxu0 0.0
        %875 = vmatpush1.msra.mxu0 0.0
        %876 = vmatprep.subr.mxu0 0.0
        %877 = vmatpush1.msra.mxu0 0.0
        %878 = vmatprep.subr.mxu0 0.0
        %879 = vmatpush1.msra.mxu0 0.0
        %880 = vmatprep.subr.mxu0 0.0
        %881 = vmatpush1.msra.mxu0 0.0
        %882 = vmatprep.mubr.f32.mxu0 0.0
        %883 = vmatmul.mubr.f32.gmra.mrb[0].mxu0 %v813
        %v884 = vpop.f32.mrb[0].mxu0
        %v885 = vadd.f32 0.0, %v884
        %v886 = vpop.f32.mrb[0].mxu0
        %887 = vdwg.mxu0
        %v888 = vadd.f32 %v802, %v885
        %s889 = scalar_lea.vmem %s237, 28 [#allocation2]
        %v890 = vld [vmem:[%s889] sm:$0xf]
        %s891 = scalar_lea.vmem %s2, 56
        %v892 = vld [vmem:[%s891] sm:$0xff]
        %v893 = vlaneseq
        %v894 = vshrl.u32 %v893, 7
        %v895 = vsub.s32 7, %v894
        %v896 = vrot.slane %v286, %v895
        %v897 = vmul.f32 %v890, %v896
        %v899 = vsel %vm305, %v892, 0
        %v902 = vsel %vm309, %v897, 0
        %904 = vmatprep.subr.mxu0 0.0
        %905 = vmatpush1.msra.mxu0 %v902
        %906 = vmatprep.subr.mxu0 0.0
        %907 = vmatpush1.msra.mxu0 0.0
        %908 = vmatprep.subr.mxu0 0.0
        %909 = vmatpush1.msra.mxu0 0.0
        %910 = vmatprep.subr.mxu0 0.0
        %911 = vmatpush1.msra.mxu0 0.0
        %912 = vmatprep.subr.mxu0 0.0
        %913 = vmatpush1.msra.mxu0 0.0
        %914 = vmatprep.subr.mxu0 0.0
        %915 = vmatpush1.msra.mxu0 0.0
        %916 = vmatprep.subr.mxu0 0.0
        %917 = vmatpush1.msra.mxu0 0.0
        %918 = vmatprep.subr.mxu0 0.0
        %919 = vmatpush1.msra.mxu0 0.0
        %920 = vmatprep.subr.mxu0 0.0
        %921 = vmatpush1.msra.mxu0 0.0
        %922 = vmatprep.subr.mxu0 0.0
        %923 = vmatpush1.msra.mxu0 0.0
        %924 = vmatprep.subr.mxu0 0.0
        %925 = vmatpush1.msra.mxu0 0.0
        %926 = vmatprep.subr.mxu0 0.0
        %927 = vmatpush1.msra.mxu0 0.0
        %928 = vmatprep.subr.mxu0 0.0
        %929 = vmatpush1.msra.mxu0 0.0
        %930 = vmatprep.subr.mxu0 0.0
        %931 = vmatpush1.msra.mxu0 0.0
        %932 = vmatprep.subr.mxu0 0.0
        %933 = vmatpush1.msra.mxu0 0.0
        %934 = vmatprep.subr.mxu0 0.0
        %935 = vmatpush1.msra.mxu0 0.0
        %936 = vmatprep.subr.mxu0 0.0
        %937 = vmatpush1.msra.mxu0 0.0
        %938 = vmatprep.subr.mxu0 0.0
        %939 = vmatpush1.msra.mxu0 0.0
        %940 = vmatprep.subr.mxu0 0.0
        %941 = vmatpush1.msra.mxu0 0.0
        %942 = vmatprep.subr.mxu0 0.0
        %943 = vmatpush1.msra.mxu0 0.0
        %944 = vmatprep.subr.mxu0 0.0
        %945 = vmatpush1.msra.mxu0 0.0
        %946 = vmatprep.subr.mxu0 0.0
        %947 = vmatpush1.msra.mxu0 0.0
        %948 = vmatprep.subr.mxu0 0.0
        %949 = vmatpush1.msra.mxu0 0.0
        %950 = vmatprep.subr.mxu0 0.0
        %951 = vmatpush1.msra.mxu0 0.0
        %952 = vmatprep.subr.mxu0 0.0
        %953 = vmatpush1.msra.mxu0 0.0
        %954 = vmatprep.subr.mxu0 0.0
        %955 = vmatpush1.msra.mxu0 0.0
        %956 = vmatprep.subr.mxu0 0.0
        %957 = vmatpush1.msra.mxu0 0.0
        %958 = vmatprep.subr.mxu0 0.0
        %959 = vmatpush1.msra.mxu0 0.0
        %960 = vmatprep.subr.mxu0 0.0
        %961 = vmatpush1.msra.mxu0 0.0
        %962 = vmatprep.subr.mxu0 0.0
        %963 = vmatpush1.msra.mxu0 0.0
        %964 = vmatprep.subr.mxu0 0.0
        %965 = vmatpush1.msra.mxu0 0.0
        %966 = vmatprep.subr.mxu0 0.0
        %967 = vmatpush1.msra.mxu0 0.0
        %968 = vmatprep.mubr.f32.mxu0 0.0
        %969 = vmatmul.mubr.f32.gmra.mrb[0].mxu0 %v899
        %v970 = vpop.f32.mrb[0].mxu0
        %v971 = vadd.f32 0.0, %v970
        %v972 = vpop.f32.mrb[0].mxu0
        %973 = vdwg.mxu0
        %v974 = vadd.f32 %v888, %v971
        %s975 = scalar_lea.vmem %s237, 32 [#allocation2]
        %v976 = vld [vmem:[%s975] sm:$0xf]
        %s977 = scalar_lea.vmem %s2, 64
        %v978 = vld [vmem:[%s977] sm:$0xff]
        %v979 = vlaneseq
        %v980 = vshrl.u32 %v979, 7
        %v981 = vsub.s32 0, %v980
        %v982 = vrot.slane %v288, %v981
        %v983 = vmul.f32 %v976, %v982
        %v985 = vsel %vm305, %v978, 0
        %v988 = vsel %vm309, %v983, 0
        %990 = vmatprep.subr.mxu0 0.0
        %991 = vmatpush1.msra.mxu0 %v988
        %992 = vmatprep.subr.mxu0 0.0
        %993 = vmatpush1.msra.mxu0 0.0
        %994 = vmatprep.subr.mxu0 0.0
        %995 = vmatpush1.msra.mxu0 0.0
        %996 = vmatprep.subr.mxu0 0.0
        %997 = vmatpush1.msra.mxu0 0.0
        %998 = vmatprep.subr.mxu0 0.0
        %999 = vmatpush1.msra.mxu0 0.0
        %1000 = vmatprep.subr.mxu0 0.0
        %1001 = vmatpush1.msra.mxu0 0.0
        %1002 = vmatprep.subr.mxu0 0.0
        %1003 = vmatpush1.msra.mxu0 0.0
        %1004 = vmatprep.subr.mxu0 0.0
        %1005 = vmatpush1.msra.mxu0 0.0
        %1006 = vmatprep.subr.mxu0 0.0
        %1007 = vmatpush1.msra.mxu0 0.0
        %1008 = vmatprep.subr.mxu0 0.0
        %1009 = vmatpush1.msra.mxu0 0.0
        %1010 = vmatprep.subr.mxu0 0.0
        %1011 = vmatpush1.msra.mxu0 0.0
        %1012 = vmatprep.subr.mxu0 0.0
        %1013 = vmatpush1.msra.mxu0 0.0
        %1014 = vmatprep.subr.mxu0 0.0
        %1015 = vmatpush1.msra.mxu0 0.0
        %1016 = vmatprep.subr.mxu0 0.0
        %1017 = vmatpush1.msra.mxu0 0.0
        %1018 = vmatprep.subr.mxu0 0.0
        %1019 = vmatpush1.msra.mxu0 0.0
        %1020 = vmatprep.subr.mxu0 0.0
        %1021 = vmatpush1.msra.mxu0 0.0
        %1022 = vmatprep.subr.mxu0 0.0
        %1023 = vmatpush1.msra.mxu0 0.0
        %1024 = vmatprep.subr.mxu0 0.0
        %1025 = vmatpush1.msra.mxu0 0.0
        %1026 = vmatprep.subr.mxu0 0.0
        %1027 = vmatpush1.msra.mxu0 0.0
        %1028 = vmatprep.subr.mxu0 0.0
        %1029 = vmatpush1.msra.mxu0 0.0
        %1030 = vmatprep.subr.mxu0 0.0
        %1031 = vmatpush1.msra.mxu0 0.0
        %1032 = vmatprep.subr.mxu0 0.0
        %1033 = vmatpush1.msra.mxu0 0.0
        %1034 = vmatprep.subr.mxu0 0.0
        %1035 = vmatpush1.msra.mxu0 0.0
        %1036 = vmatprep.subr.mxu0 0.0
        %1037 = vmatpush1.msra.mxu0 0.0
        %1038 = vmatprep.subr.mxu0 0.0
        %1039 = vmatpush1.msra.mxu0 0.0
        %1040 = vmatprep.subr.mxu0 0.0
        %1041 = vmatpush1.msra.mxu0 0.0
        %1042 = vmatprep.subr.mxu0 0.0
        %1043 = vmatpush1.msra.mxu0 0.0
        %1044 = vmatprep.subr.mxu0 0.0
        %1045 = vmatpush1.msra.mxu0 0.0
        %1046 = vmatprep.subr.mxu0 0.0
        %1047 = vmatpush1.msra.mxu0 0.0
        %1048 = vmatprep.subr.mxu0 0.0
        %1049 = vmatpush1.msra.mxu0 0.0
        %1050 = vmatprep.subr.mxu0 0.0
        %1051 = vmatpush1.msra.mxu0 0.0
        %1052 = vmatprep.subr.mxu0 0.0
        %1053 = vmatpush1.msra.mxu0 0.0
        %1054 = vmatprep.mubr.f32.mxu0 0.0
        %1055 = vmatmul.mubr.f32.gmra.mrb[0].mxu0 %v985
        %v1056 = vpop.f32.mrb[0].mxu0
        %v1057 = vadd.f32 0.0, %v1056
        %v1058 = vpop.f32.mrb[0].mxu0
        %1059 = vdwg.mxu0
        %v1060 = vadd.f32 %v974, %v1057
        %v1061 = vld [vmem:[%s3] sm:$0xff]
        %1063 = vset.pattern.permute.xlu0 0
        %1064 = vperm.xlu0 %1063, %v1061
        %v1065 = vpop.permute.xlu0 %1064
        %v1067 = vadd.f32 %v1060, %v1065
        %1068 = vst [vmem:[%s272] sm:$0xff] %v1067
        %s1069 = sand.u32 %s123, 1
        %s1070 = scalar_lea.sflag [#allocation4], %s1069
        %s1071 = sand.u32 %s123, 1
        %s1072 = smul.addr %s1071, 8
        %s1073 = scalar_lea.vmem [#allocation6], %s1072
        // Predicated region
        $region79: #{tpu_custom_call.1} parent=69 // pred_check
          %p1074 = pneg %p133
        $region80: #{tpu_custom_call.1} parent=69 // pred_check_branch
          %1076 = sbr.rel (%p1074) target = $region82
        $region81: #{tpu_custom_call.1} parent=69 // pred_region
          %s1078 = ssub.s32 128, 128
          %1079 = vsyncadd %s1070, %s1078
          %s1080 = smul.addr %s21, 128
          %s1081 = scalar_lea.hbm %s4, %s1080
          %s1083 = sshll.u32 %s1073, 4
          %s1084 = int_to_ptr.vmem [resolvable:$true] %s1083
          %1086 = dma.vmem_to_hbm [thread:$0]  %s1084, 128, %s1081, %s1070
        $region82: #{tpu_custom_call.1} parent=69 // pred_fallthru
          _
      $region70: #{tpu_custom_call.1} parent=5 // pred_fallthru
        _
      %p1087 = scmp.le.s32.totalorder 2, %s16
      // Predicated region
      $region83: #{tpu_custom_call.1} parent=5 // pred_check
        %p1088 = pneg %p1087
      $region84: #{tpu_custom_call.1} parent=5 // pred_check_branch
        %1090 = sbr.rel (%p1088) target = $region86
      $region85: #{tpu_custom_call.1} parent=5 // pred_region
        %s1091 = ssub.s32 %s16, 2
        // Predicated region
        $region87: #{tpu_custom_call.1} parent=85 // pred_check
          %p1092 = pneg %p139
        $region88: #{tpu_custom_call.1} parent=85 // pred_check_branch
          %1094 = sbr.rel (%p1092) target = $region90
        $region89: #{tpu_custom_call.1} parent=85 // pred_region
          %s1095 = sand.u32 %s124, 1
          %s1096 = scalar_lea.sflag [#allocation4], %s1095
          %s1097 = sand.u32 %s124, 1
          %s1098 = smul.addr %s1097, 8
          %s1099 = scalar_lea.vmem [#allocation6], %s1098
          %1100 = dma.done %s1096, 128
        $region90: #{tpu_custom_call.1} parent=85 // pred_fallthru
          _
      $region86: #{tpu_custom_call.1} parent=5 // pred_fallthru
        _
    $region6: #{tpu_custom_call.1} parent=1 // loop_footer
      %s20 = sadd.s32 1, %s16
    $region7: #{tpu_custom_call.1} parent=1 // loop_footer_branch
      %15 = sbr.rel target = $region3
    $region8: #{tpu_custom_call.1} parent=1 // loop_exit
      _
    %1101 = vsyncpa [#allocation3], 1
    %s1102 = scalar_lea.sflag [#allocation3], 1
    %1103 = vsyncpa %s1102, 1
    %1104 = vsyncpa [#allocation4], 1
    %s1105 = scalar_lea.sflag [#allocation4], 1
    %1106 = vsyncpa %s1105, 1

</llo_original>
